<compile_context>
chip_gen: v5e
topology: v5e:2x2
jax: 0.10.0
libtpu: 0.0.40
codegen_flags: <defaults>
</compile_context>

<pallas_src>
import jax
import jax.numpy as jnp
from jax.experimental import pallas as pl
from jax.experimental.pallas import tpu as pltpu


# ---------------------------------------------------------------------------
# hardware-derived budgets
# ---------------------------------------------------------------------------
def _round_up(n, m):
    return ((n + m - 1) // m) * m


def _hw_params():
    """(vmem_capacity_bytes, tensorcores) with conservative (v7x-safe) defaults."""
    vmem_cap = 64 << 20
    cores = 1
    try:
        info = pltpu.get_tpu_info()
        v = getattr(info, "vmem_capacity_bytes", None)
        if v:
            vmem_cap = int(v)
        for name in ("num_cores", "core_count", "tensorcore_count", "num_tensorcores"):
            c = getattr(info, name, None)
            if c:
                cores = int(c)
                break
    except Exception:
        pass  # query unavailable -> keep conservative defaults
    return vmem_cap, cores


def _largest_divisor(n, cap, multiple_of=1):
    """Largest divisor of n that is a multiple of `multiple_of` and <= cap (or None)."""
    best = None
    d = multiple_of
    limit = min(n, cap)
    while d <= limit:
        if n % d == 0:
            best = d
        d += multiple_of
    return best


def _choose_tiles_2d(R, HW, elt_bytes, tile_budget, cores):
    """Pick (block_r, tile_hw) for blocks of the (R, HW) view.

    tile_hw grows first (longer contiguous HBM runs per DMA row), then rows fill
    the remaining budget.  The >=2-blocks-on-the-parallel-axis cap is applied
    only on multi-TensorCore chips (v7x megacore).
    """
    if HW % 128 == 0:
        max_hw = max(128, tile_budget // (8 * elt_bytes))
        tile_hw = _largest_divisor(HW, max_hw, multiple_of=128) or 128
    else:
        tile_hw = HW  # full-extent lane block; caller pads when this would be too big
    per_row = tile_hw * elt_bytes
    cap_r = max(8, tile_budget // per_row)
    if cores >= 2:
        half = (R // 2) // 8 * 8
        if half >= 8:
            cap_r = min(cap_r, half)  # keep >= 2 row blocks so both TCs get work
    block_r = _largest_divisor(R, cap_r, multiple_of=8)
    if block_r is None:
        # TODO(synk): N*C not a multiple of 8 -> full-extent rows; a masked
        # tail tile would allow smaller blocks here.
        block_r = R
    return block_r, tile_hw


# ---------------------------------------------------------------------------
# kernels
# ---------------------------------------------------------------------------
def _make_fused_kernel(M, momentum, eps):
    """Single-pass training BatchNorm: x resident in VMEM, stats + normalize fused."""
    unbias = M / max(M - 1, 1)

    def kernel(x_ref, wt_ref, bt_ref, rm_ref, rv_ref, y_ref, nrm_ref, nrv_ref):
        x = x_ref[...].astype(jnp.float32)                  # (N, C, HW)
        s = jnp.sum(x, axis=2, keepdims=True)               # lane reduce   (N, C, 1)
        mean = jnp.sum(s, axis=0, keepdims=True) / M        # (1, C, 1)
        xc = x - mean                                       # exact two-pass variance
        q = jnp.sum(xc * xc, axis=2, keepdims=True)
        var = jnp.sum(q, axis=0, keepdims=True) / M         # biased batch var (1, C, 1)
        inv = jax.lax.rsqrt(var + eps)
        scale = wt_ref[...][None, :, :] * inv                # (1, C, 1)
        bias = bt_ref[...][None, :, :]
        y_ref[...] = (xc * scale + bias).astype(y_ref.dtype)
        nrm_ref[...] = (1.0 - momentum) * rm_ref[...] + momentum * mean[0]
        nrv_ref[...] = (1.0 - momentum) * rv_ref[...] + momentum * (var[0] * unbias)

    return kernel


def _stats_kernel(x_ref, sum_ref, sq_ref):
    """Per-row partial sum / sum-of-squares, accumulated over the HW grid axis."""
    @pl.when(pl.program_id(1) == 0)
    def _():
        sum_ref[...] = jnp.zeros_like(sum_ref)
        sq_ref[...] = jnp.zeros_like(sq_ref)

    x = x_ref[...].astype(jnp.float32)                      # (block_r, tile_hw)
    sum_ref[...] += jnp.sum(x, axis=1, keepdims=True)       # (block_r, 1)
    sq_ref[...] += jnp.sum(x * x, axis=1, keepdims=True)


def _normalize_kernel(x_ref, scale_ref, shift_ref, o_ref):
    """y = x * scale + shift, per-row scale/shift pre-folded in the wrapper."""
    x = x_ref[...].astype(jnp.float32)                      # (block_r, tile_hw)
    o_ref[...] = (x * scale_ref[...] + shift_ref[...]).astype(o_ref.dtype)


# ---------------------------------------------------------------------------
# wrapper
# ---------------------------------------------------------------------------
def batchnorm_curve_forward(x_nchw, weights, biases, coeffs_t,
                            running_mean, running_var, *,
                            training=True, momentum=0.1, eps=1e-5,
                            force_tiled=False):
    """Forward of curves._BatchNorm (2d flavour).  Returns (y, new_rm, new_rv, l2)."""
    # --- CurveModule.compute_weights_t (tiny glue: num_bends * C elements) ---
    weight_t = sum(c * w for c, w in zip(coeffs_t, weights))
    bias_t = sum(c * b for c, b in zip(coeffs_t, biases))
    l2 = jnp.sum(weight_t ** 2) + jnp.sum(bias_t ** 2)
    # TODO(synk): num_batches_tracked counter / momentum=None cumulative-average
    # mode is host-side bookkeeping and not modeled here.

    N, C, H, W = x_nchw.shape
    HW = H * W
    M = N * HW
    R = N * C
    dtype = x_nchw.dtype
    elt = dtype.itemsize

    vmem_cap, cores = _hw_params()
    vmem_limit = int(min(vmem_cap // 2, 64 << 20))      # 64 MiB v5e/v6e, 32 MiB v7x
    tile_budget = int(min(8 << 20, vmem_cap // 16))     # 8 MiB v5e/v6e, 4 MiB v7x

    wt32 = weight_t.astype(jnp.float32)
    bt32 = bias_t.astype(jnp.float32)
    rm32 = running_mean.astype(jnp.float32)
    rv32 = running_var.astype(jnp.float32)

    # ---------------- fused single-pass path (training, x fits VMEM) ----------------
    padded_f32 = N * _round_up(C, 8) * _round_up(HW, 128) * 4
    fused_ok = training and not force_tiled and (4 * padded_f32 + (2 << 20) <= vmem_limit)

    if fused_ok:
        x3d = x_nchw.reshape(N, C, HW)                   # contiguous NCHW view
        vmem = pl.BlockSpec(memory_space=pltpu.MemorySpace.VMEM)
        y3d, nrm, nrv = pl.pallas_call(
            _make_fused_kernel(M, momentum, eps),
            out_shape=(jax.ShapeDtypeStruct((N, C, HW), dtype),
                       jax.ShapeDtypeStruct((C, 1), jnp.float32),
                       jax.ShapeDtypeStruct((C, 1), jnp.float32)),
            in_specs=[vmem] * 5,
            out_specs=(vmem, vmem, vmem),
            compiler_params=pltpu.CompilerParams(vmem_limit_bytes=vmem_limit),
        )(x3d, wt32.reshape(C, 1), bt32.reshape(C, 1),
          rm32.reshape(C, 1), rv32.reshape(C, 1))
        return (y3d.reshape(N, C, H, W),
                nrm.reshape(C), nrv.reshape(C), l2)

    # ---------------- tiled path: 2-D (N*C, HW) view, N folded onto sublanes --------
    x2d = x_nchw.reshape(R, HW)
    if HW % 128 != 0 and 8 * HW * max(elt, 4) > tile_budget:
        # huge odd spatial size: pad lanes to a multiple of 128 (zeros are
        # stats-neutral because we divide by the true M below)
        HW_p = _round_up(HW, 128)
        x2d_p = jnp.pad(x2d, ((0, 0), (0, HW_p - HW)))
    else:
        HW_p = HW
        x2d_p = x2d

    block_r, tile_hw = _choose_tiles_2d(R, HW_p, elt, tile_budget, cores)
    r_blocks = R // block_r
    hw_blocks = HW_p // tile_hw

    if training:
        # --- reduction hot path: per-row partial sums over HW, combined per channel ---
        psum, psq = pl.pallas_call(
            _stats_kernel,
            out_shape=(jax.ShapeDtypeStruct((R, 1), jnp.float32),
                       jax.ShapeDtypeStruct((R, 1), jnp.float32)),
            grid_spec=pltpu.PrefetchScalarGridSpec(
                num_scalar_prefetch=0,
                grid=(r_blocks, hw_blocks),
                in_specs=[pl.BlockSpec((block_r, tile_hw), lambda i, k: (i, k))],
                out_specs=(pl.BlockSpec((block_r, 1), lambda i, k: (i, 0)),
                           pl.BlockSpec((block_r, 1), lambda i, k: (i, 0)))),
            compiler_params=pltpu.CompilerParams(
                dimension_semantics=("parallel", "arbitrary"),
                vmem_limit_bytes=vmem_limit),
        )(x2d_p)
        sums = jnp.sum(psum.reshape(N, C), axis=0)       # (C,)
        sqs = jnp.sum(psq.reshape(N, C), axis=0)         # (C,)
        mean_c = sums / M
        # TODO(synk): single-pass E[x^2]-E[x]^2 can lose precision when |mean|>>std;
        # a shifted/Welford block merge would be more robust for extreme inputs.
        var_c = jnp.maximum(sqs / M - mean_c * mean_c, 0.0)   # biased batch var

        unbiased = var_c * (M / max(M - 1, 1))
        new_rm = (1.0 - momentum) * rm32 + momentum * mean_c
        new_rv = (1.0 - momentum) * rv32 + momentum * unbiased
    else:
        mean_c = rm32
        var_c = rv32
        new_rm, new_rv = running_mean, running_var

    # fold mean/var/weight_t/bias_t into per-channel scale & shift, tile to rows
    inv = jax.lax.rsqrt(var_c + eps)
    scale_c = wt32 * inv
    shift_c = bt32 - mean_c * scale_c
    scale_r = jnp.broadcast_to(scale_c[None, :], (N, C)).reshape(R, 1)
    shift_r = jnp.broadcast_to(shift_c[None, :], (N, C)).reshape(R, 1)

    # --- elementwise hot path: y = x * scale + shift ---
    y2d = pl.pallas_call(
        _normalize_kernel,
        out_shape=jax.ShapeDtypeStruct((R, HW_p), dtype),
        grid_spec=pltpu.PrefetchScalarGridSpec(
            num_scalar_prefetch=0,
            grid=(r_blocks, hw_blocks),
            in_specs=[pl.BlockSpec((block_r, tile_hw), lambda i, k: (i, k)),
                      pl.BlockSpec((block_r, 1), lambda i, k: (i, 0)),
                      pl.BlockSpec((block_r, 1), lambda i, k: (i, 0))],
            out_specs=pl.BlockSpec((block_r, tile_hw), lambda i, k: (i, k))),
        compiler_params=pltpu.CompilerParams(
            dimension_semantics=("parallel", "parallel"),
            vmem_limit_bytes=vmem_limit),
    )(x2d_p, scale_r, shift_r)

    if HW_p != HW:
        y2d = y2d[:, :HW]
    return y2d.reshape(N, C, H, W), new_rm, new_rv, l2


# ---------------------------------------------------------------------------
# reference + test
# ---------------------------------------------------------------------------
def _reference_train(x_nchw, weights, biases, coeffs_t, eps):
    weight_t = sum(c * w for c, w in zip(coeffs_t, weights))
    bias_t = sum(c * b for c, b in zip(coeffs_t, biases))
    mean = jnp.mean(x_nchw, axis=(0, 2, 3))
    var = jnp.var(x_nchw, axis=(0, 2, 3))
    xh = (x_nchw - mean[None, :, None, None]) * jax.lax.rsqrt(
        var[None, :, None, None] + eps)
    return xh * weight_t[None, :, None, None] + bias_t[None, :, None, None]


def _reference_eval(x_nchw, weights, biases, coeffs_t, rm, rv, eps):
    weight_t = sum(c * w for c, w in zip(coeffs_t, weights))
    bias_t = sum(c * b for c, b in zip(coeffs_t, biases))
    xh = (x_nchw - rm[None, :, None, None]) * jax.lax.rsqrt(
        rv[None, :, None, None] + eps)
    return xh * weight_t[None, :, None, None] + bias_t[None, :, None, None]


if __name__ == "__main__":
    key = jax.random.PRNGKey(0)
    N, C, H, W = 2, 4, 16, 16
    num_bends = 3                      # fix_points = [True, False, True]

    k_x, *k_w = jax.random.split(key, 1 + num_bends)
    x = jax.random.normal(k_x, (N, C, H, W), dtype=jnp.float32)

    # reset_parameters(): weight_i ~ U(0,1), bias_i = 0
    weights = [jax.random.uniform(k, (C,), dtype=jnp.float32) for k in k_w]
    biases = [jnp.zeros((C,), dtype=jnp.float32) for _ in range(num_bends)]

    # reset_running_stats(): running_mean = 0, running_var = 1
    running_mean = jnp.zeros((C,), dtype=jnp.float32)
    running_var = jnp.ones((C,), dtype=jnp.float32)

    # Bezier-curve coefficients for t = 0.25 (what the curve code feeds in)
    t = 0.25
    coeffs_t = [(1 - t) ** 2, 2 * t * (1 - t), t ** 2]

    mean_ref = jnp.mean(x, axis=(0, 2, 3))
    var_ref = jnp.var(x, axis=(0, 2, 3), ddof=1)
    y_ref = _reference_train(x, weights, biases, coeffs_t, eps=1e-5)

    # 1) fused single-pass training path
    y, new_rm, new_rv, l2 = batchnorm_curve_forward(
        x, weights, biases, coeffs_t, running_mean, running_var,
        training=True, momentum=0.1, eps=1e-5)
    jax.block_until_ready((y, new_rm, new_rv, l2))
    assert jnp.allclose(y, y_ref, atol=1e-4, rtol=1e-4), "fused: mismatch vs reference"
    assert jnp.allclose(new_rm, 0.9 * running_mean + 0.1 * mean_ref, atol=1e-4)
    assert jnp.allclose(new_rv, 0.9 * running_var + 0.1 * var_ref, atol=1e-4)

    # 2) tiled (two-kernel) training path, forced
    y2, rm2, rv2, _ = batchnorm_curve_forward(
        x, weights, biases, coeffs_t, running_mean, running_var,
        training=True, momentum=0.1, eps=1e-5, force_tiled=True)
    jax.block_until_ready((y2, rm2, rv2))
    assert jnp.allclose(y2, y_ref, atol=1e-4, rtol=1e-4), "tiled: mismatch vs reference"
    assert jnp.allclose(rm2, 0.9 * running_mean + 0.1 * mean_ref, atol=1e-4)
    assert jnp.allclose(rv2, 0.9 * running_var + 0.1 * var_ref, atol=1e-4)

    # 3) eval mode (uses running stats, no update)
    y3, rm3, rv3, _ = batchnorm_curve_forward(
        x, weights, biases, coeffs_t, running_mean, running_var,
        training=False, momentum=0.1, eps=1e-5)
    jax.block_until_ready((y3, rm3, rv3))
    y3_ref = _reference_eval(x, weights, biases, coeffs_t,
                             running_mean, running_var, eps=1e-5)
    assert jnp.allclose(y3, y3_ref, atol=1e-4, rtol=1e-4), "eval: mismatch vs reference"
    assert jnp.allclose(rm3, running_mean) and jnp.allclose(rv3, running_var)

    print("KERNEL_OK")
</pallas_src>

<mosaic_0001>
module attributes {stable_mosaic.version = 11 : i64} {
  func.func @kernel(%arg0: memref<2x4x256xf32, #tpu.memory_space<vmem>>, %arg1: memref<4x1xf32, #tpu.memory_space<vmem>>, %arg2: memref<4x1xf32, #tpu.memory_space<vmem>>, %arg3: memref<4x1xf32, #tpu.memory_space<vmem>>, %arg4: memref<4x1xf32, #tpu.memory_space<vmem>>, %arg5: memref<2x4x256xf32, #tpu.memory_space<vmem>>, %arg6: memref<4x1xf32, #tpu.memory_space<vmem>>, %arg7: memref<4x1xf32, #tpu.memory_space<vmem>>) attributes {dimension_semantics = [], scalar_prefetch = 0 : i64, scratch_operands = 0 : i64, tpu.core_type = #tpu.core_type<tc>} {
    %c0 = arith.constant 0 : index
    %c0_0 = arith.constant 0 : index
    %c0_1 = arith.constant 0 : index
    %0 = vector.load %arg0[%c0, %c0_0, %c0_1] : memref<2x4x256xf32, #tpu.memory_space<vmem>>, vector<2x4x256xf32>
    %cst = arith.constant dense<0.000000e+00> : vector<2x4xf32>
    %1 = vector.multi_reduction <add>, %0, %cst [2] : vector<2x4x256xf32> to vector<2x4xf32>
    %2 = vector.shape_cast %1 : vector<2x4xf32> to vector<2x4x1xf32>
    %cst_2 = arith.constant dense<0.000000e+00> : vector<4x1xf32>
    %3 = vector.multi_reduction <add>, %2, %cst_2 [0] : vector<2x4x1xf32> to vector<4x1xf32>
    %4 = vector.shape_cast %3 : vector<4x1xf32> to vector<1x4x1xf32>
    %cst_3 = arith.constant 5.120000e+02 : f32
    %5 = vector.broadcast %cst_3 : f32 to vector<1x4x1xf32>
    %6 = arith.divf %4, %5 : vector<1x4x1xf32>
    %7 = vector.broadcast %6 : vector<1x4x1xf32> to vector<2x4x256xf32>
    %8 = arith.subf %0, %7 : vector<2x4x256xf32>
    %9 = arith.mulf %8, %8 : vector<2x4x256xf32>
    %cst_4 = arith.constant dense<0.000000e+00> : vector<2x4xf32>
    %10 = vector.multi_reduction <add>, %9, %cst_4 [2] : vector<2x4x256xf32> to vector<2x4xf32>
    %11 = vector.shape_cast %10 : vector<2x4xf32> to vector<2x4x1xf32>
    %cst_5 = arith.constant dense<0.000000e+00> : vector<4x1xf32>
    %12 = vector.multi_reduction <add>, %11, %cst_5 [0] : vector<2x4x1xf32> to vector<4x1xf32>
    %13 = vector.shape_cast %12 : vector<4x1xf32> to vector<1x4x1xf32>
    %cst_6 = arith.constant 5.120000e+02 : f32
    %14 = vector.broadcast %cst_6 : f32 to vector<1x4x1xf32>
    %15 = arith.divf %13, %14 : vector<1x4x1xf32>
    %cst_7 = arith.constant 9.99999974E-6 : f32
    %16 = vector.broadcast %cst_7 : f32 to vector<1x4x1xf32>
    %17 = arith.addf %15, %16 : vector<1x4x1xf32>
    %18 = math.rsqrt %17 : vector<1x4x1xf32>
    %c0_8 = arith.constant 0 : index
    %c0_9 = arith.constant 0 : index
    %19 = vector.load %arg1[%c0_8, %c0_9] : memref<4x1xf32, #tpu.memory_space<vmem>>, vector<4x1xf32>
    %20 = vector.shape_cast %19 : vector<4x1xf32> to vector<1x4x1xf32>
    %21 = arith.mulf %20, %18 : vector<1x4x1xf32>
    %c0_10 = arith.constant 0 : index
    %c0_11 = arith.constant 0 : index
    %22 = vector.load %arg2[%c0_10, %c0_11] : memref<4x1xf32, #tpu.memory_space<vmem>>, vector<4x1xf32>
    %23 = vector.shape_cast %22 : vector<4x1xf32> to vector<1x4x1xf32>
    %24 = vector.broadcast %21 : vector<1x4x1xf32> to vector<2x4x256xf32>
    %25 = arith.mulf %8, %24 : vector<2x4x256xf32>
    %26 = vector.broadcast %23 : vector<1x4x1xf32> to vector<2x4x256xf32>
    %27 = arith.addf %25, %26 : vector<2x4x256xf32>
    %c0_12 = arith.constant 0 : index
    %c0_13 = arith.constant 0 : index
    %c0_14 = arith.constant 0 : index
    %28 = vector.load %arg5[%c0_12, %c0_13, %c0_14] : memref<2x4x256xf32, #tpu.memory_space<vmem>>, vector<2x4x256xf32>
    tpu.vector_store %arg5[%c0_12, %c0_13, %c0_14], %27 {strides = array<i32>} : memref<2x4x256xf32, #tpu.memory_space<vmem>>, vector<2x4x256xf32>,
    %c0_15 = arith.constant 0 : index
    %c0_16 = arith.constant 0 : index
    %29 = vector.load %arg3[%c0_15, %c0_16] : memref<4x1xf32, #tpu.memory_space<vmem>>, vector<4x1xf32>
    %cst_17 = arith.constant 0.899999976 : f32
    %30 = vector.broadcast %cst_17 : f32 to vector<4x1xf32>
    %31 = arith.mulf %30, %29 : vector<4x1xf32>
    %32 = vector.shape_cast %6 : vector<1x4x1xf32> to vector<4x1xf32>
    %cst_18 = arith.constant 1.000000e-01 : f32
    %33 = vector.broadcast %cst_18 : f32 to vector<4x1xf32>
    %34 = arith.mulf %33, %32 : vector<4x1xf32>
    %35 = arith.addf %31, %34 : vector<4x1xf32>
    %c0_19 = arith.constant 0 : index
    %c0_20 = arith.constant 0 : index
    %36 = vector.load %arg6[%c0_19, %c0_20] : memref<4x1xf32, #tpu.memory_space<vmem>>, vector<4x1xf32>
    tpu.vector_store %arg6[%c0_19, %c0_20], %35 {strides = array<i32>} : memref<4x1xf32, #tpu.memory_space<vmem>>, vector<4x1xf32>,
    %c0_21 = arith.constant 0 : index
    %c0_22 = arith.constant 0 : index
    %37 = vector.load %arg4[%c0_21, %c0_22] : memref<4x1xf32, #tpu.memory_space<vmem>>, vector<4x1xf32>
    %cst_23 = arith.constant 0.899999976 : f32
    %38 = vector.broadcast %cst_23 : f32 to vector<4x1xf32>
    %39 = arith.mulf %38, %37 : vector<4x1xf32>
    %40 = vector.shape_cast %15 : vector<1x4x1xf32> to vector<4x1xf32>
    %cst_24 = arith.constant 1.00195694 : f32
    %41 = vector.broadcast %cst_24 : f32 to vector<4x1xf32>
    %42 = arith.mulf %40, %41 : vector<4x1xf32>
    %cst_25 = arith.constant 1.000000e-01 : f32
    %43 = vector.broadcast %cst_25 : f32 to vector<4x1xf32>
    %44 = arith.mulf %43, %42 : vector<4x1xf32>
    %45 = arith.addf %39, %44 : vector<4x1xf32>
    %c0_26 = arith.constant 0 : index
    %c0_27 = arith.constant 0 : index
    %46 = vector.load %arg7[%c0_26, %c0_27] : memref<4x1xf32, #tpu.memory_space<vmem>>, vector<4x1xf32>
    tpu.vector_store %arg7[%c0_26, %c0_27], %45 {strides = array<i32>} : memref<4x1xf32, #tpu.memory_space<vmem>>, vector<4x1xf32>,
    return
  }
}

</mosaic_0001>

<llo_original>
// kernel: tpu_custom_call.1
$region0: #{tpu_custom_call.1}
  #allocation0 [shape = 'u32[]', space=smem, size = 0x4, offset = 0x4, fixed_abs, tag = 'smem constant byte address 0x4 - core index']
  #allocation1 [shape = 'u32[72,128]{1,0:T(1,128)}', space=vmem, size = 0x9000, scoped, tag = 'internal scratch']
  %s0 = inlined_call_operand.hbm [shape: f32[2,4,256], index: 0, kind: input, shape index: {}]
  %s1 = inlined_call_operand.vmem [shape: f32[4,1], index: 1, kind: input, shape index: {}]
  %s2 = inlined_call_operand.vmem [shape: f32[4,1], index: 2, kind: input, shape index: {}]
  %s3 = inlined_call_operand.vmem [shape: f32[4,1], index: 3, kind: input, shape index: {}]
  %s4 = inlined_call_operand.vmem [shape: f32[4,1], index: 4, kind: input, shape index: {}]
  %s5 = inlined_call_operand.hbm [shape: f32[2,4,256], index: 5, kind: output, shape index: {0}]
  %s6 = inlined_call_operand.vmem [shape: f32[4,1], index: 6, kind: output, shape index: {1}]
  %s7 = inlined_call_operand.vmem [shape: f32[4,1], index: 7, kind: output, shape index: {2}]
  %8 = xla_tuple %s5, %s6, %s7
  %s9 = sld [smem:[#allocation0]]
  $region50: #{tpu_custom_call.1} parent=0
    _
  %s11 = ssub.s32 1, %s9
  %s12 = scalar_select 0, %s11, %s9
  $region1: #{tpu_custom_call.1} parent=0
    #allocation2 [shape = 'u8[8192]{0}', space=vmem, size = 0x2000, scoped, tag = 'input window, operand 0, single buffered']
    #allocation3 [shape = 's32[1]{0}', space=sflag, size = 0x4, scoped, tag = 'scoped memory for tpu_custom_call.1']
    #allocation4 [shape = 's32[1]{0}', space=sflag, size = 0x4, scoped, tag = 'scoped memory for tpu_custom_call.1']
    #allocation5 [shape = 'u8[8192]{0}', space=vmem, size = 0x2000, scoped, tag = 'output window, operand 0, single buffered']
    %13 = vsyncpa [#allocation3], 0
    %14 = vsyncpa [#allocation4], 0
    // Predicated region
    $region2: #{tpu_custom_call.1} parent=1 // pred_check
      _
    $region3: #{tpu_custom_call.1} parent=1 // pred_check_branch
      %16 = sbr.rel (0) target = $region5
    $region4: #{tpu_custom_call.1} parent=1 // pred_region
      %18 = vsyncadd [#allocation3], 0
      %s19 = sshll.u32 %s0, 4
      %s20 = int_to_ptr.hbm [resolvable:$true] %s19
      %s21 = sshll.u32 [#allocation2], 4
      %s22 = int_to_ptr.vmem [resolvable:$true] %s21
      %27 = dma.hbm_to_vmem [thread:$0]  %s20, 256, %s22, [#allocation3], 128, 128, 8
    $region5: #{tpu_custom_call.1} parent=1 // pred_fallthru
      _
    // Predicated region
    $region6: #{tpu_custom_call.1} parent=1 // pred_check
      _
    $region7: #{tpu_custom_call.1} parent=1 // pred_check_branch
      %29 = sbr.rel (0) target = $region9
    $region8: #{tpu_custom_call.1} parent=1 // pred_region
      _
    $region9: #{tpu_custom_call.1} parent=1 // pred_fallthru
      _
    // Predicated region
    $region10: #{tpu_custom_call.1} parent=1 // pred_check
      _
    $region11: #{tpu_custom_call.1} parent=1 // pred_check_branch
      %31 = sbr.rel (0) target = $region13
    $region12: #{tpu_custom_call.1} parent=1 // pred_region
      _
    $region13: #{tpu_custom_call.1} parent=1 // pred_fallthru
      _
    // Predicated region
    $region14: #{tpu_custom_call.1} parent=1 // pred_check
      _
    $region15: #{tpu_custom_call.1} parent=1 // pred_check_branch
      %33 = sbr.rel (0) target = $region17
    $region16: #{tpu_custom_call.1} parent=1 // pred_region
      _
    $region17: #{tpu_custom_call.1} parent=1 // pred_fallthru
      _
    // Predicated region
    $region18: #{tpu_custom_call.1} parent=1 // pred_check
      _
    $region19: #{tpu_custom_call.1} parent=1 // pred_check_branch
      %35 = sbr.rel (0) target = $region21
    $region20: #{tpu_custom_call.1} parent=1 // pred_region
      _
    $region21: #{tpu_custom_call.1} parent=1 // pred_fallthru
      _
    // Predicated region
    $region22: #{tpu_custom_call.1} parent=1 // pred_check
      _
    $region23: #{tpu_custom_call.1} parent=1 // pred_check_branch
      %37 = sbr.rel (0) target = $region25
    $region24: #{tpu_custom_call.1} parent=1 // pred_region
      %39 = dma.done [#allocation3], 256
    $region25: #{tpu_custom_call.1} parent=1 // pred_fallthru
      _
    %v40 = vld [vmem:[#allocation2] sm:$0xff]
    %v41 = vld [vmem:[#allocation2 + $0x8] sm:$0xff]
    %44 = vst [vmem:[#allocation1] ss:$2 sm:$0xff] %v40
    %v45 = vld.sshfl [vmem:[#allocation1] sm:$0xff pattern:$0x75316420]
    %v46 = vld.sshfl [vmem:[#allocation1 + $0x8] sm:$0xff pattern:$0x75316420]
    %s47 = scalar_lea.vmem [#allocation1], 16
    %48 = vst [vmem:[%s47] ss:$2 sm:$0xff] %v41
    %v49 = vld.sshfl [vmem:[#allocation1 + $0x10] sm:$0xff pattern:$0x75316420]
    %v50 = vld.sshfl [vmem:[#allocation1 + $0x18] sm:$0xff pattern:$0x75316420]
    %vm55 = vcmask 1043456
    %v56 = vsel %vm55, %v45, 0.0
    %v57 = vsel %vm55, %v46, 0.0
    %v58 = vadd.f32 %v56, %v57
    %59 = vadd.xlane.f32.xlu0 %v58
    %v60 = vpop.xlane.xlu0 %59
    %v61 = vsel %vm55, %v49, 0.0
    %v62 = vsel %vm55, %v50, 0.0
    %v63 = vadd.f32 %v61, %v62
    %64 = vadd.xlane.f32.xlu0 %v63
    %v65 = vpop.xlane.xlu0 %64
    %v66 = vsel %vm55, %v60, 0.0
    %v67 = vsel %vm55, %v65, 0.0
    %v68 = vadd.f32 %v66, %v67
    %v69 = vrcp.pop 512.0
    %v70 = vmul.f32 512.0, %v69
    %v71 = vsub.f32 1.0, %v70
    %v72 = vmul.f32 %v69, %v71
    %v73 = vadd.f32 %v69, %v72
    %vm74 = vweird.f32 %v69
    %v75 = vsel %vm74, %v69, %v73
    %v76 = vmul.f32 %v68, %v75
    %v79 = vunpack.c.l.s4 839922192
    %v80 = vunpack.c.0.s8 %v79
    %v81 = vperm.slane %v76, %v80
    %v83 = vsub.f32 %v40, %v81
    %v84 = vsub.f32 %v41, %v81
    %v85 = vmul.f32 %v83, %v83
    %v86 = vmul.f32 %v84, %v84
    %89 = vst [vmem:[#allocation1] ss:$2 sm:$0xff] %v85
    %v90 = vld.sshfl [vmem:[#allocation1] sm:$0xff pattern:$0x75316420]
    %v91 = vld.sshfl [vmem:[#allocation1 + $0x8] sm:$0xff pattern:$0x75316420]
    %s92 = scalar_lea.vmem [#allocation1], 16
    %93 = vst [vmem:[%s92] ss:$2 sm:$0xff] %v86
    %v94 = vld.sshfl [vmem:[#allocation1 + $0x10] sm:$0xff pattern:$0x75316420]
    %v95 = vld.sshfl [vmem:[#allocation1 + $0x18] sm:$0xff pattern:$0x75316420]
    %v100 = vsel %vm55, %v90, 0.0
    %v101 = vsel %vm55, %v91, 0.0
    %v102 = vadd.f32 %v100, %v101
    %103 = vadd.xlane.f32.xlu0 %v102
    %v104 = vpop.xlane.xlu0 %103
    %v105 = vsel %vm55, %v94, 0.0
    %v106 = vsel %vm55, %v95, 0.0
    %v107 = vadd.f32 %v105, %v106
    %108 = vadd.xlane.f32.xlu0 %v107
    %v109 = vpop.xlane.xlu0 %108
    %v110 = vsel %vm55, %v104, 0.0
    %v111 = vsel %vm55, %v109, 0.0
    %v112 = vadd.f32 %v110, %v111
    %v113 = vmul.f32 %v112, %v75
    %v114 = vadd.f32 %v113, 1e-05
    %v115 = vrsqrt.pop %v114
    %v116 = vmul.f32 %v115, %v114
    %v117 = vmul.f32 %v116, %v115
    %v118 = vmul.f32 0.5, %v117
    %v119 = vsub.f32 1.5, %v118
    %v120 = vmul.f32 %v115, %v119
    %vm121 = vweird.f32 %v114
    %vm122 = vweird.f32 %v115
    %vm123 = vmor %vm121, %vm122
    %v124 = vsel %vm123, %v115, %v120
    %v125 = vld [vmem:[%s1] sm:$0xf]
    %v126 = vmul.f32 %v125, %v124
    %v127 = vld [vmem:[%s2] sm:$0xf]
    %129 = vset.pattern.permute.xlu0 0
    %130 = vperm.xlu0 %129, %v126
    %v131 = vpop.permute.xlu0 %130
    %v133 = vunpack.c.l.s4 839922192
    %v134 = vunpack.c.0.s8 %v133
    %v135 = vperm.slane %v131, %v134
    %v137 = vmul.f32 %v83, %v135
    %v138 = vmul.f32 %v84, %v135
    %140 = vset.pattern.permute.xlu0 0
    %141 = vperm.xlu0 %140, %v127
    %v142 = vpop.permute.xlu0 %141
    %v144 = vunpack.c.l.s4 839922192
    %v145 = vunpack.c.0.s8 %v144
    %v146 = vperm.slane %v142, %v145
    %v148 = vadd.f32 %v137, %v146
    %v149 = vadd.f32 %v138, %v146
    %150 = vst [vmem:[#allocation5] sm:$0xff] %v148
    %151 = vst [vmem:[#allocation5 + $0x8] sm:$0xff] %v149
    %v152 = vld [vmem:[%s3] sm:$0xf]
    %v153 = vmul.f32 %v152, 0.9
    %v154 = vmul.f32 %v76, 0.1
    %v155 = vadd.f32 %v153, %v154
    %vm156 = vcmask 3072
    %157 = vst.msk [vmem:[%s6] sm:$0xf] %vm156, %v155
    %v158 = vld [vmem:[%s4] sm:$0xf]
    %v159 = vmul.f32 %v158, 0.9
    %v160 = vmul.f32 %v113, 1.0019569
    %v161 = vmul.f32 %v160, 0.1
    %v162 = vadd.f32 %v159, %v161
    %163 = vst.msk [vmem:[%s7] sm:$0xf] %vm156, %v162
    // Predicated region
    $region26: #{tpu_custom_call.1} parent=1 // pred_check
      _
    $region27: #{tpu_custom_call.1} parent=1 // pred_check_branch
      %165 = sbr.rel (0) target = $region29
    $region28: #{tpu_custom_call.1} parent=1 // pred_region
      %167 = vsyncadd [#allocation4], 0
      %s168 = sshll.u32 [#allocation5], 4
      %s169 = int_to_ptr.vmem [resolvable:$true] %s168
      %s170 = sshll.u32 %s5, 4
      %s171 = int_to_ptr.hbm [resolvable:$true] %s170
      %176 = dma.vmem_to_hbm [thread:$0]  %s169, 256, %s171, [#allocation4], 128, 128, 8
    $region29: #{tpu_custom_call.1} parent=1 // pred_fallthru
      _
    // Predicated region
    $region30: #{tpu_custom_call.1} parent=1 // pred_check
      _
    $region31: #{tpu_custom_call.1} parent=1 // pred_check_branch
      %178 = sbr.rel (0) target = $region33
    $region32: #{tpu_custom_call.1} parent=1 // pred_region
      _
    $region33: #{tpu_custom_call.1} parent=1 // pred_fallthru
      _
    // Predicated region
    $region34: #{tpu_custom_call.1} parent=1 // pred_check
      _
    $region35: #{tpu_custom_call.1} parent=1 // pred_check_branch
      %180 = sbr.rel (0) target = $region37
    $region36: #{tpu_custom_call.1} parent=1 // pred_region
      _
    $region37: #{tpu_custom_call.1} parent=1 // pred_fallthru
      _
    // Predicated region
    $region38: #{tpu_custom_call.1} parent=1 // pred_check
      _
    $region39: #{tpu_custom_call.1} parent=1 // pred_check_branch
      %182 = sbr.rel (0) target = $region41
    $region40: #{tpu_custom_call.1} parent=1 // pred_region
      %184 = dma.done [#allocation4], 256
    $region41: #{tpu_custom_call.1} parent=1 // pred_fallthru
      _
    // Predicated region
    $region42: #{tpu_custom_call.1} parent=1 // pred_check
      _
    $region43: #{tpu_custom_call.1} parent=1 // pred_check_branch
      %186 = sbr.rel (0) target = $region45
    $region44: #{tpu_custom_call.1} parent=1 // pred_region
      _
    $region45: #{tpu_custom_call.1} parent=1 // pred_fallthru
      _
    // Predicated region
    $region46: #{tpu_custom_call.1} parent=1 // pred_check
      _
    $region47: #{tpu_custom_call.1} parent=1 // pred_check_branch
      %188 = sbr.rel (0) target = $region49
    $region48: #{tpu_custom_call.1} parent=1 // pred_region
      _
    $region49: #{tpu_custom_call.1} parent=1 // pred_fallthru
      _
    %189 = vsyncpa [#allocation3], 1
    %190 = vsyncpa [#allocation4], 1

</llo_original>
